<compile_context>
chip_gen: v7x
topology: tpu7x:2x2x1
jax: 0.10.0
libtpu: 0.0.40
codegen_flags: <defaults>
</compile_context>

<pallas_src>
import functools
import math

import jax
import jax.numpy as jnp
from jax.experimental import pallas as pl
from jax.experimental.pallas import tpu as pltpu


# ----------------------------------------------------------------------------
# helpers
# ----------------------------------------------------------------------------

_TILE_CANDIDATES = (512, 256, 128, 64, 32, 16, 8)


def _pick_tile(n, cap):
    """Largest candidate tile <= cap that divides n (n is padded to a multiple
    of 8 beforehand, so the full-extent fallback only triggers for n < 8)."""
    for t in _TILE_CANDIDATES:
        if t <= cap and n % t == 0:
            return t
    return n


def _ceil_to(x, m):
    return (x + m - 1) // m * m


def _pad_seq_len(s):
    """Pad a sequence length so clean (8, 128)-aligned tiles exist."""
    return _ceil_to(s, 128) if s >= 128 else _ceil_to(s, 8)


def _buf_bytes(shape, dtype):
    """Bytes of one VMEM buffer after (8, 128) tile padding."""
    shape = tuple(int(d) for d in shape)
    if len(shape) == 1:
        shape = (1,) + shape
    *lead, r, c = shape
    n = 1
    for d in lead:
        n *= d
    return n * _ceil_to(r, 8) * _ceil_to(c, 128) * jnp.dtype(dtype).itemsize


def _vmem_cap_bytes():
    try:
        return int(pltpu.get_tpu_info().vmem_capacity_bytes)
    except Exception:
        return 64 << 20          # v7x floor; conservative on v5e/v6e (128 MiB)


def _vmem_limit(estimate_bytes):
    """Request enough scoped VMEM for the estimate (+ margin), clamped below
    physical VMEM (review: don't double an already pipeline-doubled estimate,
    don't request more than the chip has)."""
    return int(min(max(estimate_bytes + (4 << 20), 32 << 20), _vmem_cap_bytes()))


def _const_spec(shape, index_map, single_buffer):
    """BlockSpec for a grid-constant block (weights / biases).  When the
    resident footprint is large we request a single buffer so constants are
    not double-buffered (matters for v7x's 64 MiB VMEM)."""
    if single_buffer:
        try:
            return pl.BlockSpec(shape, index_map, pipeline_mode=pl.Buffered(1))
        except Exception:        # jax version without pipeline_mode support
            pass
    return pl.BlockSpec(shape, index_map)


# ----------------------------------------------------------------------------
# Kernel 1a: fused Q/K/V projection for self-attention (one (D, 3D) GEMM)
# ----------------------------------------------------------------------------

def _qkv_fused_proj_kernel(x_ref, w_ref, b_ref, qo_ref, ko_ref, vo_ref, *,
                           d_model):
    # bf16 operands on the MXU, f32 accumulation, f32 bias.
    y = jnp.dot(x_ref[...], w_ref[...],
                preferred_element_type=jnp.float32) + b_ref[...]
    D = d_model
    qo_ref[...] = y[:, :D].astype(qo_ref.dtype)
    ko_ref[...] = y[:, D:2 * D].astype(ko_ref.dtype)
    vo_ref[...] = y[:, 2 * D:].astype(vo_ref.dtype)


# ----------------------------------------------------------------------------
# Kernel 1b: separate Q/K/V projections (general cross-attention inputs)
# ----------------------------------------------------------------------------

def _qkv_proj_kernel(q_ref, k_ref, v_ref,
                     wq_ref, bq_ref, wk_ref, bk_ref, wv_ref, bv_ref,
                     qo_ref, ko_ref, vo_ref):
    qo_ref[...] = (jnp.dot(q_ref[...], wq_ref[...],
                           preferred_element_type=jnp.float32)
                   + bq_ref[...]).astype(qo_ref.dtype)
    ko_ref[...] = (jnp.dot(k_ref[...], wk_ref[...],
                           preferred_element_type=jnp.float32)
                   + bk_ref[...]).astype(ko_ref.dtype)
    vo_ref[...] = (jnp.dot(v_ref[...], wv_ref[...],
                           preferred_element_type=jnp.float32)
                   + bv_ref[...]).astype(vo_ref.dtype)


# ----------------------------------------------------------------------------
# Kernel 2: flash attention (online softmax) + fused output projection
# ----------------------------------------------------------------------------

def _flash_attn_out_kernel(q_ref, k_ref, v_ref, wo_ref, bo_ref, o_ref,
                           m_ref, l_ref, acc_ref, *,
                           num_heads, head_dim, kv_len, kv_tile, mask_kv):
    # q_ref: (tq, D)  k_ref/v_ref: (tk, D)  o_ref: (tq, D)
    # m_ref/l_ref: (tq, H) f32   acc_ref: (tq, D) f32
    ki = pl.program_id(2)
    H, hd = num_heads, head_dim

    @pl.when(ki == 0)
    def _init():
        m_ref[...] = jnp.full(m_ref.shape, -1e30, dtype=m_ref.dtype)
        l_ref[...] = jnp.zeros(l_ref.shape, dtype=l_ref.dtype)
        acc_ref[...] = jnp.zeros(acc_ref.shape, dtype=acc_ref.dtype)

    # 1/sqrt(head_dim) is already folded into the Q projection weights.
    q = q_ref[...]
    k = k_ref[...]
    v = v_ref[...]

    m_prev = m_ref[...]        # (tq, H) single lane-dense load
    l_prev = l_ref[...]

    if mask_kv:
        kv_pos = ki * kv_tile + jax.lax.broadcasted_iota(
            jnp.int32, (1, kv_tile), 1)
        kv_valid = kv_pos < kv_len                       # (1, tk)

    m_new_cols, l_new_cols, alpha_cols, pv_cols = [], [], [], []
    # TODO(synk): if a bundle dump shows this kernel MXU-bound for hd<128,
    # emit Q/K/V head-major from kernel 1 and batch heads in one dot_general
    # instead of this unrolled per-head loop.
    for h in range(H):
        c0, c1 = h * hd, (h + 1) * hd
        qh = q[:, c0:c1]                                 # (tq, hd)
        kh = k[:, c0:c1]                                 # (tk, hd)
        vh = v[:, c0:c1]                                 # (tk, hd)

        s = jax.lax.dot_general(                         # Q @ K^T -> (tq, tk)
            qh, kh, (((1,), (1,)), ((), ())),
            preferred_element_type=jnp.float32)
        if mask_kv:
            s = jnp.where(kv_valid, s, jnp.float32(-1e30))

        m_h = m_prev[:, h:h + 1]                         # (tq, 1)
        m_new = jnp.maximum(m_h, jnp.max(s, axis=-1, keepdims=True))
        alpha = jnp.exp(m_h - m_new)
        # exp kept in f32 (EUP); on v6e/v7x a bf16 exp is possible if EUP-bound.
        p = jnp.exp(s - m_new)                           # (tq, tk) f32

        l_new_cols.append(alpha * l_prev[:, h:h + 1]
                          + jnp.sum(p, axis=-1, keepdims=True))
        m_new_cols.append(m_new)
        alpha_cols.append(jnp.broadcast_to(alpha, (alpha.shape[0], hd)))
        pv_cols.append(jnp.dot(p.astype(vh.dtype), vh,
                               preferred_element_type=jnp.float32))

    # Single full-width, lane-dense updates (no per-head masked stores).
    m_ref[...] = jnp.concatenate(m_new_cols, axis=-1)    # (tq, H)
    l_ref[...] = jnp.concatenate(l_new_cols, axis=-1)    # (tq, H)
    alpha_full = jnp.concatenate(alpha_cols, axis=-1)    # (tq, D)
    pv_full = jnp.concatenate(pv_cols, axis=-1)          # (tq, D)
    acc_ref[...] = alpha_full * acc_ref[...] + pv_full

    @pl.when(ki == pl.num_programs(2) - 1)
    def _finalize():
        # Exact reciprocal: the approx=True EUP reciprocal caused a ~3e-3
        # error; this runs once per output tile so the exact divide is cheap.
        inv = 1.0 / l_ref[...]                           # (tq, H) f32
        inv_full = jnp.concatenate(
            [jnp.broadcast_to(inv[:, h:h + 1], (inv.shape[0], hd))
             for h in range(H)], axis=-1)                # (tq, D)
        attn = (acc_ref[...] * inv_full).astype(wo_ref.dtype)
        out = jnp.dot(attn, wo_ref[...],
                      preferred_element_type=jnp.float32) + bo_ref[...]
        o_ref[...] = out.astype(o_ref.dtype)


# ----------------------------------------------------------------------------
# Wrapper
# ----------------------------------------------------------------------------

def prepare_params(params, num_heads, compute_dtype=jnp.bfloat16):
    """One-time weight prep (cache the result; do not redo per call).

    PyTorch nn.Linear stores W as (out, in); we keep (in, out).  The softmax
    scale 1/sqrt(head_dim) is folded into the query projection (exact
    reformulation).  Weights are cast to the MXU compute dtype (bf16 by
    default); biases stay f32 (added after the f32 accumulation)."""
    d_model = params['wq'].shape[0]
    assert d_model % num_heads == 0, "d_model must be divisible by num_heads"
    scale = 1.0 / math.sqrt(d_model // num_heads)
    f32 = jnp.float32

    wq = (jnp.asarray(params['wq'], f32).T * scale).astype(compute_dtype)
    wk = jnp.asarray(params['wk'], f32).T.astype(compute_dtype)
    wv = jnp.asarray(params['wv'], f32).T.astype(compute_dtype)
    wo = jnp.asarray(params['wo'], f32).T.astype(compute_dtype)
    bq = (jnp.asarray(params['bq'], f32) * scale).reshape(1, d_model)
    bk = jnp.asarray(params['bk'], f32).reshape(1, d_model)
    bv = jnp.asarray(params['bv'], f32).reshape(1, d_model)
    bo = jnp.asarray(params['bo'], f32).reshape(1, d_model)

    return dict(
        d_model=d_model, num_heads=num_heads, compute_dtype=compute_dtype,
        wq=wq, wk=wk, wv=wv, wo=wo, bq=bq, bk=bk, bv=bv, bo=bo,
        wqkv=jnp.concatenate([wq, wk, wv], axis=1),     # (D, 3D) self-attn
        bqkv=jnp.concatenate([bq, bk, bv], axis=1))     # (1, 3D)


def multi_head_attention(query, key, value, prep, *, tq=None, tk=None):
    """Forward pass of the PyTorch MultiHeadAttention module.

    query: (B, Sq, D); key/value: (B, Skv, D).  Returns (B, Sq, D) in
    query.dtype."""
    D = prep['d_model']
    H = prep['num_heads']
    cdt = prep['compute_dtype']
    B, Sq, Dq = query.shape
    Bk, Skv, Dk = key.shape
    assert Dq == D and Dk == D and value.shape == key.shape and Bk == B
    hd = D // H
    out_dtype = query.dtype
    f32 = jnp.float32

    self_attn = (query is key) and (key is value)

    # Pad sequence lengths so (8,128)-aligned tiles exist; kv tail is masked.
    S_pad = max(_pad_seq_len(Sq), _pad_seq_len(Skv))

    def pad_cast(x):
        x = x.astype(cdt)
        if x.shape[1] != S_pad:
            x = jnp.pad(x, ((0, 0), (0, S_pad - x.shape[1]), (0, 0)))
        return x

    qx = pad_cast(query)
    if self_attn:
        kx = vx = qx
    else:
        kx = pad_cast(key)
        vx = pad_cast(value)

    rows = B * S_pad

    # ---- 1) Q/K/V input projections, tiled over rows of (B*S_pad, D) ------
    tm = _pick_tile(rows, cap=512)   # v6e has VMEM headroom for 512-row tiles
    row_spec = pl.BlockSpec((tm, D), lambda i: (i, 0))
    grid1 = (rows // tm,)

    if self_attn:
        wqkv, bqkv = prep['wqkv'], prep['bqkv']
        const_bytes = _buf_bytes((D, 3 * D), cdt) + _buf_bytes((1, 3 * D), f32)
        single_buf = 2 * const_bytes > (16 << 20)
        w_spec = _const_spec((D, 3 * D), lambda i: (0, 0), single_buf)
        b_spec = _const_spec((1, 3 * D), lambda i: (0, 0), single_buf)
        est = (2 * _buf_bytes((tm, D), cdt)              # x in (double buffer)
               + 2 * 3 * _buf_bytes((tm, D), cdt)        # q/k/v out
               + 2 * const_bytes)                        # resident weights
        q2, k2, v2 = pl.pallas_call(
            functools.partial(_qkv_fused_proj_kernel, d_model=D),
            out_shape=tuple(jax.ShapeDtypeStruct((rows, D), cdt)
                            for _ in range(3)),
            grid=grid1,
            in_specs=[row_spec, w_spec, b_spec],
            out_specs=(row_spec, row_spec, row_spec),
            compiler_params=pltpu.CompilerParams(
                dimension_semantics=("parallel",),
                vmem_limit_bytes=_vmem_limit(est)),
        )(qx.reshape(rows, D), wqkv, bqkv)
    else:
        const_bytes = 3 * (_buf_bytes((D, D), cdt) + _buf_bytes((1, D), f32))
        single_buf = 2 * const_bytes > (16 << 20)
        w_spec = _const_spec((D, D), lambda i: (0, 0), single_buf)
        b_spec = _const_spec((1, D), lambda i: (0, 0), single_buf)
        est = (2 * 3 * _buf_bytes((tm, D), cdt)          # q/k/v in
               + 2 * 3 * _buf_bytes((tm, D), cdt)        # q/k/v out
               + 2 * const_bytes)
        q2, k2, v2 = pl.pallas_call(
            _qkv_proj_kernel,
            out_shape=tuple(jax.ShapeDtypeStruct((rows, D), cdt)
                            for _ in range(3)),
            grid=grid1,
            in_specs=[row_spec, row_spec, row_spec,
                      w_spec, b_spec, w_spec, b_spec, w_spec, b_spec],
            out_specs=(row_spec, row_spec, row_spec),
            compiler_params=pltpu.CompilerParams(
                dimension_semantics=("parallel",),
                vmem_limit_bytes=_vmem_limit(est)),
        )(qx.reshape(rows, D), kx.reshape(rows, D), vx.reshape(rows, D),
          prep['wq'], prep['bq'], prep['wk'], prep['bk'], prep['wv'], prep['bv'])

    Q = q2.reshape(B, S_pad, D)
    K = k2.reshape(B, S_pad, D)
    V = v2.reshape(B, S_pad, D)

    # ---- 2) flash attention + fused output projection ----------------------
    if tq is None:
        tq = _pick_tile(S_pad, cap=256)   # cap score tile (avoid vreg spills)
    if tk is None:
        tk = _pick_tile(S_pad, cap=128)
    assert S_pad % tq == 0 and (tq % 8 == 0 or tq == S_pad)
    assert S_pad % tk == 0 and (tk % 8 == 0 or tk == S_pad)
    # Keep >= 2 parallel grid steps so both v7x TensorCores get work.
    while B * (S_pad // tq) < 2 and tq >= 16 and tq % 16 == 0:
        tq //= 2

    mask_kv = (S_pad != Skv)
    kernel = functools.partial(
        _flash_attn_out_kernel, num_heads=H, head_dim=hd,
        kv_len=Skv, kv_tile=tk, mask_kv=mask_kv)

    q_spec = pl.BlockSpec((None, tq, D), lambda b, qi, ki: (b, qi, 0))
    kv_spec = pl.BlockSpec((None, tk, D), lambda b, qi, ki: (b, ki, 0))
    o_spec = pl.BlockSpec((None, tq, D), lambda b, qi, ki: (b, qi, 0))
    const_bytes = _buf_bytes((D, D), cdt) + _buf_bytes((1, D), f32)
    single_buf = 2 * const_bytes > (16 << 20)
    wo_spec = _const_spec((D, D), lambda b, qi, ki: (0, 0), single_buf)
    bo_spec = _const_spec((1, D), lambda b, qi, ki: (0, 0), single_buf)

    est = (2 * _buf_bytes((tq, D), cdt)                  # Q tiles
           + 2 * 2 * _buf_bytes((tk, D), cdt)            # K + V tiles
           + 2 * _buf_bytes((tq, D), out_dtype)          # output tiles
           + 2 * const_bytes                             # Wo + bo
           + 2 * _buf_bytes((tq, H), f32)                # m + l stats
           + _buf_bytes((tq, D), f32))                   # acc

    out = pl.pallas_call(
        kernel,
        out_shape=jax.ShapeDtypeStruct((B, S_pad, D), out_dtype),
        grid=(B, S_pad // tq, S_pad // tk),
        in_specs=[q_spec, kv_spec, kv_spec, wo_spec, bo_spec],
        out_specs=o_spec,
        scratch_shapes=[pltpu.VMEM((tq, H), f32),        # m (running max)
                        pltpu.VMEM((tq, H), f32),        # l (running sum)
                        pltpu.VMEM((tq, D), f32)],       # acc
        compiler_params=pltpu.CompilerParams(
            dimension_semantics=("parallel", "parallel", "arbitrary"),
            vmem_limit_bytes=_vmem_limit(est)),
    )(Q, K, V, prep['wo'], prep['bo'])

    if S_pad != Sq:
        out = out[:, :Sq, :]
    return out


# ----------------------------------------------------------------------------
# Plain-JAX reference (matches the PyTorch forward exactly, f32)
# ----------------------------------------------------------------------------

def _reference_mha(query, key, value, params, num_heads):
    B, Sq, D = query.shape
    Skv = key.shape[1]
    hd = D // num_heads
    lin = lambda x, w, b: x @ w.T + b
    Q = lin(query, params['wq'], params['bq'])
    K = lin(key, params['wk'], params['bk'])
    V = lin(value, params['wv'], params['bv'])
    split = lambda x, s: x.reshape(B, s, num_heads, hd).transpose(0, 2, 1, 3)
    Qh, Kh, Vh = split(Q, Sq), split(K, Skv), split(V, Skv)
    scores = jnp.einsum('bhqd,bhkd->bhqk', Qh, Kh) / jnp.sqrt(jnp.float32(hd))
    w = jax.nn.softmax(scores, axis=-1)
    attn = jnp.einsum('bhqk,bhkd->bhqd', w, Vh)
    attn = attn.transpose(0, 2, 1, 3).reshape(B, Sq, D)
    return lin(attn, params['wo'], params['bo'])


if __name__ == "__main__":
    # Small shapes consistent with the module's forward.
    B, S, D, H = 2, 16, 32, 4   # batch, seq, d_model, num_heads

    root = jax.random.PRNGKey(0)
    keys = jax.random.split(root, 11)

    wscale = 1.0 / math.sqrt(D)
    params = {
        'wq': jax.random.normal(keys[0], (D, D), jnp.float32) * wscale,
        'bq': jax.random.normal(keys[1], (D,), jnp.float32) * 0.01,
        'wk': jax.random.normal(keys[2], (D, D), jnp.float32) * wscale,
        'bk': jax.random.normal(keys[3], (D,), jnp.float32) * 0.01,
        'wv': jax.random.normal(keys[4], (D, D), jnp.float32) * wscale,
        'bv': jax.random.normal(keys[5], (D,), jnp.float32) * 0.01,
        'wo': jax.random.normal(keys[6], (D, D), jnp.float32) * wscale,
        'bo': jax.random.normal(keys[7], (D,), jnp.float32) * 0.01,
    }

    query = jax.random.normal(keys[8], (B, S, D), jnp.float32)
    key_in = jax.random.normal(keys[9], (B, S, D), jnp.float32)
    value = jax.random.normal(keys[10], (B, S, D), jnp.float32)

    prep = prepare_params(params, H, compute_dtype=jnp.bfloat16)

    # Cross-attention (distinct q/k/v): 3-input projection kernel; tq=tk=8
    # forces 2 kv steps so the online-softmax rescale path is exercised.
    out_cross = jax.block_until_ready(
        multi_head_attention(query, key_in, value, prep, tq=8, tk=8))
    ref_cross = _reference_mha(query, key_in, value, params, H)

    # Self-attention (same tensor three times): fused (D, 3D) projection path.
    out_self = jax.block_until_ready(
        multi_head_attention(query, query, query, prep))
    ref_self = _reference_mha(query, query, query, params, H)

    tol = dict(atol=3e-2, rtol=3e-2)    # bf16 MXU operands vs f32 reference
    for name, out, ref in (("cross", out_cross, ref_cross),
                           ("self", out_self, ref_self)):
        assert out.shape == ref.shape
        out32 = out.astype(jnp.float32)
        max_diff = jnp.max(jnp.abs(out32 - ref))
        assert jnp.allclose(out32, ref, **tol), \
            f"{name}: max abs diff {max_diff}"

    print("KERNEL_OK")
</pallas_src>

<mosaic_0001>
module attributes {stable_mosaic.version = 11 : i64} {
  func.func @_qkv_proj_kernel(%arg0: i32, %arg1: memref<32x32xbf16, #tpu.memory_space<vmem>>, %arg2: memref<32x32xbf16, #tpu.memory_space<vmem>>, %arg3: memref<32x32xbf16, #tpu.memory_space<vmem>>, %arg4: memref<32x32xbf16, #tpu.memory_space<vmem>>, %arg5: memref<1x32xf32, #tpu.memory_space<vmem>>, %arg6: memref<32x32xbf16, #tpu.memory_space<vmem>>, %arg7: memref<1x32xf32, #tpu.memory_space<vmem>>, %arg8: memref<32x32xbf16, #tpu.memory_space<vmem>>, %arg9: memref<1x32xf32, #tpu.memory_space<vmem>>, %arg10: memref<32x32xbf16, #tpu.memory_space<vmem>>, %arg11: memref<32x32xbf16, #tpu.memory_space<vmem>>, %arg12: memref<32x32xbf16, #tpu.memory_space<vmem>>) attributes {dimension_semantics = [#tpu.dimension_semantics<parallel>], iteration_bounds = array<i64: 1>, scalar_prefetch = 0 : i64, scratch_operands = 0 : i64, tpu.core_type = #tpu.core_type<tc>, window_params = [{transform_indices = @transform_0, window_bounds = array<i64: 32, 32>}, {transform_indices = @transform_1, window_bounds = array<i64: 32, 32>}, {transform_indices = @transform_2, window_bounds = array<i64: 32, 32>}, {pipeline_mode = #tpu.pipeline_mode<synchronous>, transform_indices = @transform_3, window_bounds = array<i64: 32, 32>}, {pipeline_mode = #tpu.pipeline_mode<synchronous>, transform_indices = @transform_4, window_bounds = array<i64: 1, 32>}, {pipeline_mode = #tpu.pipeline_mode<synchronous>, transform_indices = @transform_5, window_bounds = array<i64: 32, 32>}, {pipeline_mode = #tpu.pipeline_mode<synchronous>, transform_indices = @transform_6, window_bounds = array<i64: 1, 32>}, {pipeline_mode = #tpu.pipeline_mode<synchronous>, transform_indices = @transform_7, window_bounds = array<i64: 32, 32>}, {pipeline_mode = #tpu.pipeline_mode<synchronous>, transform_indices = @transform_8, window_bounds = array<i64: 1, 32>}, {transform_indices = @transform_9, window_bounds = array<i64: 32, 32>}, {transform_indices = @transform_10, window_bounds = array<i64: 32, 32>}, {transform_indices = @transform_11, window_bounds = array<i64: 32, 32>}]} {
    %c0 = arith.constant 0 : index
    %c0_0 = arith.constant 0 : index
    %0 = vector.load %arg1[%c0, %c0_0] : memref<32x32xbf16, #tpu.memory_space<vmem>>, vector<32x32xbf16>
    %c0_1 = arith.constant 0 : index
    %c0_2 = arith.constant 0 : index
    %1 = vector.load %arg4[%c0_1, %c0_2] : memref<32x32xbf16, #tpu.memory_space<vmem>>, vector<32x32xbf16>
    %cst = arith.constant dense<0.000000e+00> : vector<32x32xf32>
    %2 = tpu.matmul %0, %1, %cst {dimension_numbers = #tpu.dot_dimension_numbers<[1], [0], [0], [1], [0, 0, 1, 1], [], []>} : vector<32x32xbf16>, vector<32x32xbf16>, vector<32x32xf32> -> vector<32x32xf32>
    %c0_3 = arith.constant 0 : index
    %c0_4 = arith.constant 0 : index
    %3 = vector.load %arg5[%c0_3, %c0_4] : memref<1x32xf32, #tpu.memory_space<vmem>>, vector<1x32xf32>
    %4 = vector.broadcast %3 : vector<1x32xf32> to vector<32x32xf32>
    %5 = arith.addf %2, %4 : vector<32x32xf32>
    %6 = arith.truncf %5 : vector<32x32xf32> to vector<32x32xbf16>
    %c0_5 = arith.constant 0 : index
    %c0_6 = arith.constant 0 : index
    %7 = vector.load %arg10[%c0_5, %c0_6] : memref<32x32xbf16, #tpu.memory_space<vmem>>, vector<32x32xbf16>
    tpu.vector_store %arg10[%c0_5, %c0_6], %6 {strides = array<i32>} : memref<32x32xbf16, #tpu.memory_space<vmem>>, vector<32x32xbf16>,
    %c0_7 = arith.constant 0 : index
    %c0_8 = arith.constant 0 : index
    %8 = vector.load %arg2[%c0_7, %c0_8] : memref<32x32xbf16, #tpu.memory_space<vmem>>, vector<32x32xbf16>
    %c0_9 = arith.constant 0 : index
    %c0_10 = arith.constant 0 : index
    %9 = vector.load %arg6[%c0_9, %c0_10] : memref<32x32xbf16, #tpu.memory_space<vmem>>, vector<32x32xbf16>
    %cst_11 = arith.constant dense<0.000000e+00> : vector<32x32xf32>
    %10 = tpu.matmul %8, %9, %cst_11 {dimension_numbers = #tpu.dot_dimension_numbers<[1], [0], [0], [1], [0, 0, 1, 1], [], []>} : vector<32x32xbf16>, vector<32x32xbf16>, vector<32x32xf32> -> vector<32x32xf32>
    %c0_12 = arith.constant 0 : index
    %c0_13 = arith.constant 0 : index
    %11 = vector.load %arg7[%c0_12, %c0_13] : memref<1x32xf32, #tpu.memory_space<vmem>>, vector<1x32xf32>
    %12 = vector.broadcast %11 : vector<1x32xf32> to vector<32x32xf32>
    %13 = arith.addf %10, %12 : vector<32x32xf32>
    %14 = arith.truncf %13 : vector<32x32xf32> to vector<32x32xbf16>
    %c0_14 = arith.constant 0 : index
    %c0_15 = arith.constant 0 : index
    %15 = vector.load %arg11[%c0_14, %c0_15] : memref<32x32xbf16, #tpu.memory_space<vmem>>, vector<32x32xbf16>
    tpu.vector_store %arg11[%c0_14, %c0_15], %14 {strides = array<i32>} : memref<32x32xbf16, #tpu.memory_space<vmem>>, vector<32x32xbf16>,
    %c0_16 = arith.constant 0 : index
    %c0_17 = arith.constant 0 : index
    %16 = vector.load %arg3[%c0_16, %c0_17] : memref<32x32xbf16, #tpu.memory_space<vmem>>, vector<32x32xbf16>
    %c0_18 = arith.constant 0 : index
    %c0_19 = arith.constant 0 : index
    %17 = vector.load %arg8[%c0_18, %c0_19] : memref<32x32xbf16, #tpu.memory_space<vmem>>, vector<32x32xbf16>
    %cst_20 = arith.constant dense<0.000000e+00> : vector<32x32xf32>
    %18 = tpu.matmul %16, %17, %cst_20 {dimension_numbers = #tpu.dot_dimension_numbers<[1], [0], [0], [1], [0, 0, 1, 1], [], []>} : vector<32x32xbf16>, vector<32x32xbf16>, vector<32x32xf32> -> vector<32x32xf32>
    %c0_21 = arith.constant 0 : index
    %c0_22 = arith.constant 0 : index
    %19 = vector.load %arg9[%c0_21, %c0_22] : memref<1x32xf32, #tpu.memory_space<vmem>>, vector<1x32xf32>
    %20 = vector.broadcast %19 : vector<1x32xf32> to vector<32x32xf32>
    %21 = arith.addf %18, %20 : vector<32x32xf32>
    %22 = arith.truncf %21 : vector<32x32xf32> to vector<32x32xbf16>
    %c0_23 = arith.constant 0 : index
    %c0_24 = arith.constant 0 : index
    %23 = vector.load %arg12[%c0_23, %c0_24] : memref<32x32xbf16, #tpu.memory_space<vmem>>, vector<32x32xbf16>
    tpu.vector_store %arg12[%c0_23, %c0_24], %22 {strides = array<i32>} : memref<32x32xbf16, #tpu.memory_space<vmem>>, vector<32x32xbf16>,
    return
  }
  func.func @transform_0(%arg0: i32) -> (i32, i32) {
    %c0_i32 = arith.constant 0 : i32
    %c0_i32_0 = arith.constant 0 : i32
    return %arg0, %c0_i32 : i32, i32
  }
  func.func @transform_1(%arg0: i32) -> (i32, i32) {
    %c0_i32 = arith.constant 0 : i32
    %c0_i32_0 = arith.constant 0 : i32
    return %arg0, %c0_i32 : i32, i32
  }
  func.func @transform_2(%arg0: i32) -> (i32, i32) {
    %c0_i32 = arith.constant 0 : i32
    %c0_i32_0 = arith.constant 0 : i32
    return %arg0, %c0_i32 : i32, i32
  }
  func.func @transform_3(%arg0: i32) -> (i32, i32) {
    %c0_i32 = arith.constant 0 : i32
    %c0_i32_0 = arith.constant 0 : i32
    %c0_i32_1 = arith.constant 0 : i32
    return %c0_i32, %c0_i32_0 : i32, i32
  }
  func.func @transform_4(%arg0: i32) -> (i32, i32) {
    %c0_i32 = arith.constant 0 : i32
    %c0_i32_0 = arith.constant 0 : i32
    %c0_i32_1 = arith.constant 0 : i32
    return %c0_i32, %c0_i32_0 : i32, i32
  }
  func.func @transform_5(%arg0: i32) -> (i32, i32) {
    %c0_i32 = arith.constant 0 : i32
    %c0_i32_0 = arith.constant 0 : i32
    %c0_i32_1 = arith.constant 0 : i32
    return %c0_i32, %c0_i32_0 : i32, i32
  }
  func.func @transform_6(%arg0: i32) -> (i32, i32) {
    %c0_i32 = arith.constant 0 : i32
    %c0_i32_0 = arith.constant 0 : i32
    %c0_i32_1 = arith.constant 0 : i32
    return %c0_i32, %c0_i32_0 : i32, i32
  }
  func.func @transform_7(%arg0: i32) -> (i32, i32) {
    %c0_i32 = arith.constant 0 : i32
    %c0_i32_0 = arith.constant 0 : i32
    %c0_i32_1 = arith.constant 0 : i32
    return %c0_i32, %c0_i32_0 : i32, i32
  }
  func.func @transform_8(%arg0: i32) -> (i32, i32) {
    %c0_i32 = arith.constant 0 : i32
    %c0_i32_0 = arith.constant 0 : i32
    %c0_i32_1 = arith.constant 0 : i32
    return %c0_i32, %c0_i32_0 : i32, i32
  }
  func.func @transform_9(%arg0: i32) -> (i32, i32) {
    %c0_i32 = arith.constant 0 : i32
    %c0_i32_0 = arith.constant 0 : i32
    return %arg0, %c0_i32 : i32, i32
  }
  func.func @transform_10(%arg0: i32) -> (i32, i32) {
    %c0_i32 = arith.constant 0 : i32
    %c0_i32_0 = arith.constant 0 : i32
    return %arg0, %c0_i32 : i32, i32
  }
  func.func @transform_11(%arg0: i32) -> (i32, i32) {
    %c0_i32 = arith.constant 0 : i32
    %c0_i32_0 = arith.constant 0 : i32
    return %arg0, %c0_i32 : i32, i32
  }
}

</mosaic_0001>

<llo_original>
// kernel: tpu_custom_call.1
$region0: #{tpu_custom_call.1}
  #allocation0 [shape = 'u32[]', space=smem, size = 0x4, offset = 0x4, fixed_abs, tag = 'smem constant byte address 0x4 - core index']
  #allocation1 [shape = 'u32[144,128]{1,0:T(1,128)}', space=vmem, size = 0x12000, scoped, tag = 'internal scratch']
  %s0 = inlined_call_operand.hbm [shape: bf16[32,32], index: 0, kind: input, shape index: {}]
  %s1 = inlined_call_operand.hbm [shape: bf16[32,32], index: 1, kind: input, shape index: {}]
  %s2 = inlined_call_operand.hbm [shape: bf16[32,32], index: 2, kind: input, shape index: {}]
  %s3 = inlined_call_operand.hbm [shape: bf16[32,32], index: 3, kind: input, shape index: {}]
  %s4 = inlined_call_operand.vmem [shape: f32[1,32], index: 4, kind: input, shape index: {}]
  %s5 = inlined_call_operand.vmem [shape: bf16[32,32], index: 5, kind: input, shape index: {}]
  %s6 = inlined_call_operand.vmem [shape: f32[1,32], index: 6, kind: input, shape index: {}]
  %s7 = inlined_call_operand.hbm [shape: bf16[32,32], index: 7, kind: input, shape index: {}]
  %s8 = inlined_call_operand.vmem [shape: f32[1,32], index: 8, kind: input, shape index: {}]
  %s9 = inlined_call_operand.hbm [shape: bf16[32,32], index: 9, kind: output, shape index: {0}]
  %s10 = inlined_call_operand.hbm [shape: bf16[32,32], index: 10, kind: output, shape index: {1}]
  %s11 = inlined_call_operand.hbm [shape: bf16[32,32], index: 11, kind: output, shape index: {2}]
  %12 = xla_tuple %s9, %s10, %s11
  %s13 = sld [smem:[#allocation0]]
  $region82: #{tpu_custom_call.1} parent=0
    _
  %s15 = ssub.s32 1, %s13
  %s16 = scalar_select 0, %s15, %s13
  $region1: #{tpu_custom_call.1} parent=0
    #allocation2 [shape = 'u8[8192]{0}', space=vmem, size = 0x2000, scoped, tag = 'input window, operand 0, single buffered']
    #allocation3 [shape = 's32[1]{0}', space=sflag, size = 0x4, scoped, tag = 'scoped memory for tpu_custom_call.1']
    #allocation4 [shape = 's32[1]{0}', space=sflag, size = 0x4, scoped, tag = 'scoped memory for tpu_custom_call.1']
    #allocation5 [shape = 'u8[8192]{0}', space=vmem, size = 0x2000, scoped, tag = 'input window, operand 1, single buffered']
    #allocation6 [shape = 's32[1]{0}', space=sflag, size = 0x4, scoped, tag = 'scoped memory for tpu_custom_call.1']
    #allocation7 [shape = 'u8[8192]{0}', space=vmem, size = 0x2000, scoped, tag = 'input window, operand 2, single buffered']
    #allocation8 [shape = 'u8[8192]{0}', space=vmem, size = 0x2000, scoped, tag = 'input window, operand 3, single buffered']
    #allocation9 [shape = 's32[1]{0}', space=sflag, size = 0x4, scoped, tag = 'scoped memory for tpu_custom_call.1']
    #allocation10 [shape = 'u8[8192]{0}', space=vmem, size = 0x2000, scoped, tag = 'input window, operand 7, single buffered']
    #allocation11 [shape = 'u8[8192]{0}', space=vmem, size = 0x2000, scoped, tag = 'output window, operand 0, single buffered']
    #allocation12 [shape = 'u8[8192]{0}', space=vmem, size = 0x2000, scoped, tag = 'output window, operand 1, single buffered']
    #allocation13 [shape = 's32[1]{0}', space=sflag, size = 0x4, scoped, tag = 'scoped memory for tpu_custom_call.1']
    #allocation14 [shape = 'u8[8192]{0}', space=vmem, size = 0x2000, scoped, tag = 'output window, operand 2, single buffered']
    %17 = vsyncpa [#allocation3], 0
    %18 = vsyncpa [#allocation6], 0
    %19 = vsyncpa [#allocation9], 0
    %20 = vsyncpa [#allocation4], 0
    %21 = vsyncpa [#allocation13], 0
    // Predicated region
    $region2: #{tpu_custom_call.1} parent=1 // pred_check
      _
    $region3: #{tpu_custom_call.1} parent=1 // pred_check_branch
      %23 = sbr.rel (0) target = $region5
    $region4: #{tpu_custom_call.1} parent=1 // pred_region
      %s25 = ssub.s32 256, 256
      %26 = vsyncadd [#allocation3], %s25
      %s27 = sshll.u32 [#allocation2], 4
      %s28 = int_to_ptr.vmem [resolvable:$true] %s27
      %33 = dma.hbm_to_vmem [thread:$0]  %s0, 256, %s28, [#allocation3], 64, 64, 4
    $region5: #{tpu_custom_call.1} parent=1 // pred_fallthru
      _
    // Predicated region
    $region6: #{tpu_custom_call.1} parent=1 // pred_check
      _
    $region7: #{tpu_custom_call.1} parent=1 // pred_check_branch
      %35 = sbr.rel (0) target = $region9
    $region8: #{tpu_custom_call.1} parent=1 // pred_region
      %s37 = ssub.s32 256, 256
      %38 = vsyncadd [#allocation6], %s37
      %s39 = sshll.u32 [#allocation5], 4
      %s40 = int_to_ptr.vmem [resolvable:$true] %s39
      %45 = dma.hbm_to_vmem [thread:$0]  %s1, 256, %s40, [#allocation6], 64, 64, 4
    $region9: #{tpu_custom_call.1} parent=1 // pred_fallthru
      _
    // Predicated region
    $region10: #{tpu_custom_call.1} parent=1 // pred_check
      _
    $region11: #{tpu_custom_call.1} parent=1 // pred_check_branch
      %47 = sbr.rel (0) target = $region13
    $region12: #{tpu_custom_call.1} parent=1 // pred_region
      %s49 = ssub.s32 256, 256
      %50 = vsyncadd [#allocation6], %s49
      %s51 = sshll.u32 [#allocation7], 4
      %s52 = int_to_ptr.vmem [resolvable:$true] %s51
      %57 = dma.hbm_to_vmem [thread:$0]  %s2, 256, %s52, [#allocation6], 64, 64, 4
    $region13: #{tpu_custom_call.1} parent=1 // pred_fallthru
      _
    // Predicated region
    $region14: #{tpu_custom_call.1} parent=1 // pred_check
      _
    $region15: #{tpu_custom_call.1} parent=1 // pred_check_branch
      %59 = sbr.rel (0) target = $region17
    $region16: #{tpu_custom_call.1} parent=1 // pred_region
      %s61 = ssub.s32 256, 256
      %62 = vsyncadd [#allocation9], %s61
      %s63 = sshll.u32 [#allocation8], 4
      %s64 = int_to_ptr.vmem [resolvable:$true] %s63
      %69 = dma.hbm_to_vmem [thread:$0]  %s3, 256, %s64, [#allocation9], 64, 64, 4
    $region17: #{tpu_custom_call.1} parent=1 // pred_fallthru
      _
    // Predicated region
    $region18: #{tpu_custom_call.1} parent=1 // pred_check
      _
    $region19: #{tpu_custom_call.1} parent=1 // pred_check_branch
      %71 = sbr.rel (0) target = $region21
    $region20: #{tpu_custom_call.1} parent=1 // pred_region
      _
    $region21: #{tpu_custom_call.1} parent=1 // pred_fallthru
      _
    // Predicated region
    $region22: #{tpu_custom_call.1} parent=1 // pred_check
      _
    $region23: #{tpu_custom_call.1} parent=1 // pred_check_branch
      %73 = sbr.rel (0) target = $region25
    $region24: #{tpu_custom_call.1} parent=1 // pred_region
      _
    $region25: #{tpu_custom_call.1} parent=1 // pred_fallthru
      _
    // Predicated region
    $region26: #{tpu_custom_call.1} parent=1 // pred_check
      _
    $region27: #{tpu_custom_call.1} parent=1 // pred_check_branch
      %75 = sbr.rel (0) target = $region29
    $region28: #{tpu_custom_call.1} parent=1 // pred_region
      _
    $region29: #{tpu_custom_call.1} parent=1 // pred_fallthru
      _
    // Predicated region
    $region30: #{tpu_custom_call.1} parent=1 // pred_check
      _
    $region31: #{tpu_custom_call.1} parent=1 // pred_check_branch
      %77 = sbr.rel (0) target = $region33
    $region32: #{tpu_custom_call.1} parent=1 // pred_region
      %s79 = ssub.s32 256, 256
      %80 = vsyncadd [#allocation9], %s79
      %s81 = sshll.u32 [#allocation10], 4
      %s82 = int_to_ptr.vmem [resolvable:$true] %s81
      %87 = dma.hbm_to_vmem [thread:$0]  %s7, 256, %s82, [#allocation9], 64, 64, 4
    $region33: #{tpu_custom_call.1} parent=1 // pred_fallthru
      _
    // Predicated region
    $region34: #{tpu_custom_call.1} parent=1 // pred_check
      _
    $region35: #{tpu_custom_call.1} parent=1 // pred_check_branch
      %89 = sbr.rel (0) target = $region37
    $region36: #{tpu_custom_call.1} parent=1 // pred_region
      _
    $region37: #{tpu_custom_call.1} parent=1 // pred_fallthru
      _
    // Predicated region
    $region38: #{tpu_custom_call.1} parent=1 // pred_check
      _
    $region39: #{tpu_custom_call.1} parent=1 // pred_check_branch
      %91 = sbr.rel (0) target = $region41
    $region40: #{tpu_custom_call.1} parent=1 // pred_region
      %92 = dma.done [#allocation3], 256
    $region41: #{tpu_custom_call.1} parent=1 // pred_fallthru
      _
    // Predicated region
    $region42: #{tpu_custom_call.1} parent=1 // pred_check
      _
    $region43: #{tpu_custom_call.1} parent=1 // pred_check_branch
      %94 = sbr.rel (0) target = $region45
    $region44: #{tpu_custom_call.1} parent=1 // pred_region
      %95 = dma.done [#allocation6], 256
    $region45: #{tpu_custom_call.1} parent=1 // pred_fallthru
      _
    // Predicated region
    $region46: #{tpu_custom_call.1} parent=1 // pred_check
      _
    $region47: #{tpu_custom_call.1} parent=1 // pred_check_branch
      %97 = sbr.rel (0) target = $region49
    $region48: #{tpu_custom_call.1} parent=1 // pred_region
      %98 = dma.done [#allocation6], 256
    $region49: #{tpu_custom_call.1} parent=1 // pred_fallthru
      _
    // Predicated region
    $region50: #{tpu_custom_call.1} parent=1 // pred_check
      _
    $region51: #{tpu_custom_call.1} parent=1 // pred_check_branch
      %100 = sbr.rel (0) target = $region53
    $region52: #{tpu_custom_call.1} parent=1 // pred_region
      %101 = dma.done [#allocation9], 256
    $region53: #{tpu_custom_call.1} parent=1 // pred_fallthru
      _
    // Predicated region
    $region54: #{tpu_custom_call.1} parent=1 // pred_check
      _
    $region55: #{tpu_custom_call.1} parent=1 // pred_check_branch
      %103 = sbr.rel (0) target = $region57
    $region56: #{tpu_custom_call.1} parent=1 // pred_region
      %104 = dma.done [#allocation9], 256
    $region57: #{tpu_custom_call.1} parent=1 // pred_fallthru
      _
    %v106 = vld [vmem:[#allocation2] sm:$0xf]
    %v107 = vld [vmem:[#allocation2 + $0x4] sm:$0xf]
    %v108 = vld [vmem:[#allocation2 + $0x8] sm:$0xf]
    %v109 = vld [vmem:[#allocation2 + $0xc] sm:$0xf]
    %v110 = vld [vmem:[#allocation8] sm:$0xf]
    %v111 = vld [vmem:[#allocation8 + $0x4] sm:$0xf]
    %v112 = vld [vmem:[#allocation8 + $0x8] sm:$0xf]
    %v113 = vld [vmem:[#allocation8 + $0xc] sm:$0xf]
    %v114 = vld [vmem:[%s4] sm:$0x1]
    %v116 = vlaneseq
    %v117 = vshrl.u32 %v116, 7
    %v118 = vsub.s32 0, %v117
    %v119 = vrot.slane %v114, %v118
    %v125 = vunpack.c.l.b16 %v106
    %v126 = vunpack.c.l.b16 %v107
    %v127 = vunpack.c.l.b16 %v108
    %v128 = vunpack.c.l.b16 %v109
    %v129 = vpack.c.b16 %v126, %v125
    %v130 = vpack.c.b16 %v128, %v127
    %v135 = vunpack.c.l.b16 %v110
    %v136 = vunpack.c.l.b16 %v111
    %v137 = vunpack.c.l.b16 %v112
    %v138 = vunpack.c.l.b16 %v113
    %v139 = vpack.c.b16 %v136, %v135
    %v140 = vpack.c.b16 %v138, %v137
    %vm143 = vcmask 261120
    %v145 = vsel %vm143, %v129, 0
    %v148 = vsel %vm143, %v130, 0
    %150 = vmatprep.subr.bf16.mxu0 0
    %151 = vmatpush1.bf16.msra.mxu0 %v139
    %152 = vmatprep.subr.bf16.mxu0 0
    %153 = vmatpush1.bf16.msra.mxu0 %v140
    %154 = vmatprep.subr.bf16.mxu0 0
    %155 = vmatpush1.bf16.msra.mxu0 0
    %156 = vmatprep.subr.bf16.mxu0 0
    %157 = vmatpush1.bf16.msra.mxu0 0
    %158 = vmatprep.subr.bf16.mxu0 0
    %159 = vmatpush1.bf16.msra.mxu0 0
    %160 = vmatprep.subr.bf16.mxu0 0
    %161 = vmatpush1.bf16.msra.mxu0 0
    %162 = vmatprep.subr.bf16.mxu0 0
    %163 = vmatpush1.bf16.msra.mxu0 0
    %164 = vmatprep.subr.bf16.mxu0 0
    %165 = vmatpush1.bf16.msra.mxu0 0
    %166 = vmatprep.subr.bf16.mxu0 0
    %167 = vmatpush1.bf16.msra.mxu0 0
    %168 = vmatprep.subr.bf16.mxu0 0
    %169 = vmatpush1.bf16.msra.mxu0 0
    %170 = vmatprep.subr.bf16.mxu0 0
    %171 = vmatpush1.bf16.msra.mxu0 0
    %172 = vmatprep.subr.bf16.mxu0 0
    %173 = vmatpush1.bf16.msra.mxu0 0
    %174 = vmatprep.subr.bf16.mxu0 0
    %175 = vmatpush1.bf16.msra.mxu0 0
    %176 = vmatprep.subr.bf16.mxu0 0
    %177 = vmatpush1.bf16.msra.mxu0 0
    %178 = vmatprep.subr.bf16.mxu0 0
    %179 = vmatpush1.bf16.msra.mxu0 0
    %180 = vmatprep.subr.bf16.mxu0 0
    %181 = vmatpush1.bf16.msra.mxu0 0
    %182 = vmatprep.mubr.bf16.mxu0 0
    %183 = vmatmul.mubr.bf16.gmra.mrb[0].mxu0 %v145
    %v184 = vpop.f32.mrb[0].mxu0
    %v185 = vadd.f32 %v119, %v184
    %v186 = vpop.f32.mrb[0].mxu0
    %v187 = vpop.f32.mrb[0].mxu0
    %v188 = vadd.f32 %v119, %v187
    %v189 = vpop.f32.mrb[0].mxu0
    %190 = vmatprep.mubr.bf16.mxu0 0
    %191 = vmatmul.mubr.bf16.gmra.mrb[0].mxu0 %v148
    %v192 = vpop.f32.mrb[0].mxu0
    %v193 = vadd.f32 %v119, %v192
    %v194 = vpop.f32.mrb[0].mxu0
    %v195 = vpop.f32.mrb[0].mxu0
    %v196 = vadd.f32 %v119, %v195
    %v197 = vpop.f32.mrb[0].mxu0
    %198 = vdwg.mxu0
    %v199 = vpack.c.bf16 %v188, %v185
    %v200 = vpack.c.bf16 %v196, %v193
    %v203 = vunpack.c.l.b16 %v199
    %v204 = vunpack.c.h.b16 %v199
    %v205 = vunpack.c.l.b16 %v200
    %v206 = vunpack.c.h.b16 %v200
    %v207 = vpack.c.b16 %v203, %v203
    %v208 = vpack.c.b16 %v204, %v204
    %v209 = vpack.c.b16 %v205, %v205
    %v210 = vpack.c.b16 %v206, %v206
    %vm215 = vcmask 257024
    %216 = vst.msk [vmem:[#allocation11] sm:$0xf] %vm215, %v207
    %217 = vst.msk [vmem:[#allocation11 + $0x4] sm:$0xf] %vm215, %v208
    %218 = vst.msk [vmem:[#allocation11 + $0x8] sm:$0xf] %vm215, %v209
    %219 = vst.msk [vmem:[#allocation11 + $0xc] sm:$0xf] %vm215, %v210
    %v220 = vld [vmem:[#allocation5] sm:$0xf]
    %v221 = vld [vmem:[#allocation5 + $0x4] sm:$0xf]
    %v222 = vld [vmem:[#allocation5 + $0x8] sm:$0xf]
    %v223 = vld [vmem:[#allocation5 + $0xc] sm:$0xf]
    %v224 = vld [vmem:[%s5] sm:$0xf]
    %v225 = vld [vmem:[%s5 + $0x4] sm:$0xf]
    %v226 = vld [vmem:[%s5 + $0x8] sm:$0xf]
    %v227 = vld [vmem:[%s5 + $0xc] sm:$0xf]
    %v228 = vld [vmem:[%s6] sm:$0x1]
    %v230 = vlaneseq
    %v231 = vshrl.u32 %v230, 7
    %v232 = vsub.s32 0, %v231
    %v233 = vrot.slane %v228, %v232
    %v239 = vunpack.c.l.b16 %v220
    %v240 = vunpack.c.l.b16 %v221
    %v241 = vunpack.c.l.b16 %v222
    %v242 = vunpack.c.l.b16 %v223
    %v243 = vpack.c.b16 %v240, %v239
    %v244 = vpack.c.b16 %v242, %v241
    %v249 = vunpack.c.l.b16 %v224
    %v250 = vunpack.c.l.b16 %v225
    %v251 = vunpack.c.l.b16 %v226
    %v252 = vunpack.c.l.b16 %v227
    %v253 = vpack.c.b16 %v250, %v249
    %v254 = vpack.c.b16 %v252, %v251
    %v258 = vsel %vm143, %v243, 0
    %v261 = vsel %vm143, %v244, 0
    %263 = vmatprep.subr.bf16.mxu0 0
    %264 = vmatpush1.bf16.msra.mxu0 %v253
    %265 = vmatprep.subr.bf16.mxu0 0
    %266 = vmatpush1.bf16.msra.mxu0 %v254
    %267 = vmatprep.subr.bf16.mxu0 0
    %268 = vmatpush1.bf16.msra.mxu0 0
    %269 = vmatprep.subr.bf16.mxu0 0
    %270 = vmatpush1.bf16.msra.mxu0 0
    %271 = vmatprep.subr.bf16.mxu0 0
    %272 = vmatpush1.bf16.msra.mxu0 0
    %273 = vmatprep.subr.bf16.mxu0 0
    %274 = vmatpush1.bf16.msra.mxu0 0
    %275 = vmatprep.subr.bf16.mxu0 0
    %276 = vmatpush1.bf16.msra.mxu0 0
    %277 = vmatprep.subr.bf16.mxu0 0
    %278 = vmatpush1.bf16.msra.mxu0 0
    %279 = vmatprep.subr.bf16.mxu0 0
    %280 = vmatpush1.bf16.msra.mxu0 0
    %281 = vmatprep.subr.bf16.mxu0 0
    %282 = vmatpush1.bf16.msra.mxu0 0
    %283 = vmatprep.subr.bf16.mxu0 0
    %284 = vmatpush1.bf16.msra.mxu0 0
    %285 = vmatprep.subr.bf16.mxu0 0
    %286 = vmatpush1.bf16.msra.mxu0 0
    %287 = vmatprep.subr.bf16.mxu0 0
    %288 = vmatpush1.bf16.msra.mxu0 0
    %289 = vmatprep.subr.bf16.mxu0 0
    %290 = vmatpush1.bf16.msra.mxu0 0
    %291 = vmatprep.subr.bf16.mxu0 0
    %292 = vmatpush1.bf16.msra.mxu0 0
    %293 = vmatprep.subr.bf16.mxu0 0
    %294 = vmatpush1.bf16.msra.mxu0 0
    %295 = vmatprep.mubr.bf16.mxu0 0
    %296 = vmatmul.mubr.bf16.gmra.mrb[0].mxu0 %v258
    %v297 = vpop.f32.mrb[0].mxu0
    %v298 = vadd.f32 %v233, %v297
    %v299 = vpop.f32.mrb[0].mxu0
    %v300 = vpop.f32.mrb[0].mxu0
    %v301 = vadd.f32 %v233, %v300
    %v302 = vpop.f32.mrb[0].mxu0
    %303 = vmatprep.mubr.bf16.mxu0 0
    %304 = vmatmul.mubr.bf16.gmra.mrb[0].mxu0 %v261
    %v305 = vpop.f32.mrb[0].mxu0
    %v306 = vadd.f32 %v233, %v305
    %v307 = vpop.f32.mrb[0].mxu0
    %v308 = vpop.f32.mrb[0].mxu0
    %v309 = vadd.f32 %v233, %v308
    %v310 = vpop.f32.mrb[0].mxu0
    %311 = vdwg.mxu0
    %v312 = vpack.c.bf16 %v301, %v298
    %v313 = vpack.c.bf16 %v309, %v306
    %v316 = vunpack.c.l.b16 %v312
    %v317 = vunpack.c.h.b16 %v312
    %v318 = vunpack.c.l.b16 %v313
    %v319 = vunpack.c.h.b16 %v313
    %v320 = vpack.c.b16 %v316, %v316
    %v321 = vpack.c.b16 %v317, %v317
    %v322 = vpack.c.b16 %v318, %v318
    %v323 = vpack.c.b16 %v319, %v319
    %328 = vst.msk [vmem:[#allocation12] sm:$0xf] %vm215, %v320
    %329 = vst.msk [vmem:[#allocation12 + $0x4] sm:$0xf] %vm215, %v321
    %330 = vst.msk [vmem:[#allocation12 + $0x8] sm:$0xf] %vm215, %v322
    %331 = vst.msk [vmem:[#allocation12 + $0xc] sm:$0xf] %vm215, %v323
    %v332 = vld [vmem:[#allocation7] sm:$0xf]
    %v333 = vld [vmem:[#allocation7 + $0x4] sm:$0xf]
    %v334 = vld [vmem:[#allocation7 + $0x8] sm:$0xf]
    %v335 = vld [vmem:[#allocation7 + $0xc] sm:$0xf]
    %v336 = vld [vmem:[#allocation10] sm:$0xf]
    %v337 = vld [vmem:[#allocation10 + $0x4] sm:$0xf]
    %v338 = vld [vmem:[#allocation10 + $0x8] sm:$0xf]
    %v339 = vld [vmem:[#allocation10 + $0xc] sm:$0xf]
    %v340 = vld [vmem:[%s8] sm:$0x1]
    %v342 = vlaneseq
    %v343 = vshrl.u32 %v342, 7
    %v344 = vsub.s32 0, %v343
    %v345 = vrot.slane %v340, %v344
    %v351 = vunpack.c.l.b16 %v332
    %v352 = vunpack.c.l.b16 %v333
    %v353 = vunpack.c.l.b16 %v334
    %v354 = vunpack.c.l.b16 %v335
    %v355 = vpack.c.b16 %v352, %v351
    %v356 = vpack.c.b16 %v354, %v353
    %v361 = vunpack.c.l.b16 %v336
    %v362 = vunpack.c.l.b16 %v337
    %v363 = vunpack.c.l.b16 %v338
    %v364 = vunpack.c.l.b16 %v339
    %v365 = vpack.c.b16 %v362, %v361
    %v366 = vpack.c.b16 %v364, %v363
    %v370 = vsel %vm143, %v355, 0
    %v373 = vsel %vm143, %v356, 0
    %375 = vmatprep.subr.bf16.mxu0 0
    %376 = vmatpush1.bf16.msra.mxu0 %v365
    %377 = vmatprep.subr.bf16.mxu0 0
    %378 = vmatpush1.bf16.msra.mxu0 %v366
    %379 = vmatprep.subr.bf16.mxu0 0
    %380 = vmatpush1.bf16.msra.mxu0 0
    %381 = vmatprep.subr.bf16.mxu0 0
    %382 = vmatpush1.bf16.msra.mxu0 0
    %383 = vmatprep.subr.bf16.mxu0 0
    %384 = vmatpush1.bf16.msra.mxu0 0
    %385 = vmatprep.subr.bf16.mxu0 0
    %386 = vmatpush1.bf16.msra.mxu0 0
    %387 = vmatprep.subr.bf16.mxu0 0
    %388 = vmatpush1.bf16.msra.mxu0 0
    %389 = vmatprep.subr.bf16.mxu0 0
    %390 = vmatpush1.bf16.msra.mxu0 0
    %391 = vmatprep.subr.bf16.mxu0 0
    %392 = vmatpush1.bf16.msra.mxu0 0
    %393 = vmatprep.subr.bf16.mxu0 0
    %394 = vmatpush1.bf16.msra.mxu0 0
    %395 = vmatprep.subr.bf16.mxu0 0
    %396 = vmatpush1.bf16.msra.mxu0 0
    %397 = vmatprep.subr.bf16.mxu0 0
    %398 = vmatpush1.bf16.msra.mxu0 0
    %399 = vmatprep.subr.bf16.mxu0 0
    %400 = vmatpush1.bf16.msra.mxu0 0
    %401 = vmatprep.subr.bf16.mxu0 0
    %402 = vmatpush1.bf16.msra.mxu0 0
    %403 = vmatprep.subr.bf16.mxu0 0
    %404 = vmatpush1.bf16.msra.mxu0 0
    %405 = vmatprep.subr.bf16.mxu0 0
    %406 = vmatpush1.bf16.msra.mxu0 0
    %407 = vmatprep.mubr.bf16.mxu0 0
    %408 = vmatmul.mubr.bf16.gmra.mrb[0].mxu0 %v370
    %v409 = vpop.f32.mrb[0].mxu0
    %v410 = vadd.f32 %v345, %v409
    %v411 = vpop.f32.mrb[0].mxu0
    %v412 = vpop.f32.mrb[0].mxu0
    %v413 = vadd.f32 %v345, %v412
    %v414 = vpop.f32.mrb[0].mxu0
    %415 = vmatprep.mubr.bf16.mxu0 0
    %416 = vmatmul.mubr.bf16.gmra.mrb[0].mxu0 %v373
    %v417 = vpop.f32.mrb[0].mxu0
    %v418 = vadd.f32 %v345, %v417
    %v419 = vpop.f32.mrb[0].mxu0
    %v420 = vpop.f32.mrb[0].mxu0
    %v421 = vadd.f32 %v345, %v420
    %v422 = vpop.f32.mrb[0].mxu0
    %423 = vdwg.mxu0
    %v424 = vpack.c.bf16 %v413, %v410
    %v425 = vpack.c.bf16 %v421, %v418
    %v428 = vunpack.c.l.b16 %v424
    %v429 = vunpack.c.h.b16 %v424
    %v430 = vunpack.c.l.b16 %v425
    %v431 = vunpack.c.h.b16 %v425
    %v432 = vpack.c.b16 %v428, %v428
    %v433 = vpack.c.b16 %v429, %v429
    %v434 = vpack.c.b16 %v430, %v430
    %v435 = vpack.c.b16 %v431, %v431
    %440 = vst.msk [vmem:[#allocation14] sm:$0xf] %vm215, %v432
    %441 = vst.msk [vmem:[#allocation14 + $0x4] sm:$0xf] %vm215, %v433
    %442 = vst.msk [vmem:[#allocation14 + $0x8] sm:$0xf] %vm215, %v434
    %443 = vst.msk [vmem:[#allocation14 + $0xc] sm:$0xf] %vm215, %v435
    // Predicated region
    $region58: #{tpu_custom_call.1} parent=1 // pred_check
      _
    $region59: #{tpu_custom_call.1} parent=1 // pred_check_branch
      %445 = sbr.rel (0) target = $region61
    $region60: #{tpu_custom_call.1} parent=1 // pred_region
      %s447 = ssub.s32 256, 256
      %448 = vsyncadd [#allocation4], %s447
      %s449 = sshll.u32 [#allocation11], 4
      %s450 = int_to_ptr.vmem [resolvable:$true] %s449
      %455 = dma.vmem_to_hbm [thread:$0]  %s450, 256, %s9, [#allocation4], 64, 64, 4
    $region61: #{tpu_custom_call.1} parent=1 // pred_fallthru
      _
    // Predicated region
    $region62: #{tpu_custom_call.1} parent=1 // pred_check
      _
    $region63: #{tpu_custom_call.1} parent=1 // pred_check_branch
      %457 = sbr.rel (0) target = $region65
    $region64: #{tpu_custom_call.1} parent=1 // pred_region
      %s459 = ssub.s32 256, 256
      %460 = vsyncadd [#allocation13], %s459
      %s461 = sshll.u32 [#allocation12], 4
      %s462 = int_to_ptr.vmem [resolvable:$true] %s461
      %467 = dma.vmem_to_hbm [thread:$0]  %s462, 256, %s10, [#allocation13], 64, 64, 4
    $region65: #{tpu_custom_call.1} parent=1 // pred_fallthru
      _
    // Predicated region
    $region66: #{tpu_custom_call.1} parent=1 // pred_check
      _
    $region67: #{tpu_custom_call.1} parent=1 // pred_check_branch
      %469 = sbr.rel (0) target = $region69
    $region68: #{tpu_custom_call.1} parent=1 // pred_region
      %s471 = ssub.s32 256, 256
      %472 = vsyncadd [#allocation13], %s471
      %s473 = sshll.u32 [#allocation14], 4
      %s474 = int_to_ptr.vmem [resolvable:$true] %s473
      %479 = dma.vmem_to_hbm [thread:$0]  %s474, 256, %s11, [#allocation13], 64, 64, 4
    $region69: #{tpu_custom_call.1} parent=1 // pred_fallthru
      _
    // Predicated region
    $region70: #{tpu_custom_call.1} parent=1 // pred_check
      _
    $region71: #{tpu_custom_call.1} parent=1 // pred_check_branch
      %481 = sbr.rel (0) target = $region73
    $region72: #{tpu_custom_call.1} parent=1 // pred_region
      %482 = dma.done [#allocation4], 256
    $region73: #{tpu_custom_call.1} parent=1 // pred_fallthru
      _
    // Predicated region
    $region74: #{tpu_custom_call.1} parent=1 // pred_check
      _
    $region75: #{tpu_custom_call.1} parent=1 // pred_check_branch
      %484 = sbr.rel (0) target = $region77
    $region76: #{tpu_custom_call.1} parent=1 // pred_region
      %485 = dma.done [#allocation13], 256
    $region77: #{tpu_custom_call.1} parent=1 // pred_fallthru
      _
    // Predicated region
    $region78: #{tpu_custom_call.1} parent=1 // pred_check
      _
    $region79: #{tpu_custom_call.1} parent=1 // pred_check_branch
      %487 = sbr.rel (0) target = $region81
    $region80: #{tpu_custom_call.1} parent=1 // pred_region
      %488 = dma.done [#allocation13], 256
    $region81: #{tpu_custom_call.1} parent=1 // pred_fallthru
      _
    %489 = vsyncpa [#allocation3], 1
    %490 = vsyncpa [#allocation6], 1
    %491 = vsyncpa [#allocation9], 1
    %492 = vsyncpa [#allocation4], 1
    %493 = vsyncpa [#allocation13], 1

</llo_original>
